<compile_context>
chip_gen: v7x
topology: tpu7x:2x2x1
jax: 0.10.0
libtpu: 0.0.40
codegen_flags: <defaults>
</compile_context>

<pallas_src>
import jax
import jax.numpy as jnp
from jax.experimental import pallas as pl
from jax.experimental.pallas import tpu as pltpu


def _fold_factor(d: int) -> int:
    """Indices folded into one stored output row so fold*D fills full 128-lane
    vregs (prefer 256 = two unmasked vregs per stored row)."""
    for lanes in (256, 128):
        if d <= lanes and lanes % d == 0:
            return lanes // d
    # D >= 128 or awkward D: no folding (masked stores if D % 128 != 0 --
    # known perf cliff, still correct).
    return 1


def _make_embed_kernel(min_val: int, vocab: int, fold: int):
    """idx_ref: (TNR, fold) int32 raw values; bdtab_ref: (fold*V, fold*D) f32
    block-diagonal table; out_ref: (TNR, fold*D) f32 where stored row r is
    concat_f table[idx[r, f] - min_val]."""

    def embed_kernel(idx_ref, bdtab_ref, out_ref):
        idx = idx_ref[...] - min_val                       # (TNR, fold), shifted
        tnr = idx.shape[0]
        fv = bdtab_ref.shape[0]                            # fold * vocab

        # Single-pass one-hot build (review item 1): pick the target column for
        # each fold block with a select chain, then one compare.  Out-of-range
        # idx[r, f] puts its target outside block f's own columns, so it simply
        # matches nothing (all-zero embedding row) -- no valid/-1 masking needed.
        cols = jax.lax.broadcasted_iota(jnp.int32, (tnr, fv), 1)
        tgt = idx[:, 0:1]                                  # target col, block 0
        for f in range(1, fold):                           # static, fully unrolled
            tgt = jnp.where(cols >= f * vocab, idx[:, f:f + 1] + f * vocab, tgt)
        onehot = (cols == tgt).astype(jnp.float32)         # (TNR, fv)

        # Row gather == one-hot @ block-diag table on the MXU.  HIGHEST keeps the
        # full f32 mantissa of the table rows -> bit-exact gather.
        out_ref[...] = jnp.dot(
            onehot,
            bdtab_ref[...],
            preferred_element_type=jnp.float32,
            precision=jax.lax.Precision.HIGHEST,
        )

    return embed_kernel


def _embed_pallas(idx2d, bdtab, min_val: int, vocab: int, fold: int, tnr: int):
    nr_pad, _ = idx2d.shape
    fv, fd = bdtab.shape
    grid = (nr_pad // tnr,)

    cost = pl.CostEstimate(
        flops=2 * nr_pad * fv * fd,
        transcendentals=0,
        bytes_accessed=nr_pad * fold * 4 + fv * fd * 4 + nr_pad * fd * 4,
    )

    return pl.pallas_call(
        _make_embed_kernel(min_val, vocab, fold),
        out_shape=jax.ShapeDtypeStruct((nr_pad, fd), jnp.float32),
        grid=grid,
        in_specs=[
            # Index tile marches with the grid (auto double-buffered).
            pl.BlockSpec((tnr, fold), lambda i: (i, 0)),
            # Constant block index -> Pallas skips re-DMA after the first step;
            # the ~128 KiB table stays VMEM-resident for the whole grid.
            pl.BlockSpec((fv, fd), lambda i: (0, 0)),
        ],
        out_specs=pl.BlockSpec((tnr, fd), lambda i: (i, 0)),
        compiler_params=pltpu.CompilerParams(
            # Output tiles are disjoint per grid step -> safe to parallelize.
            # TODO(synk): on v7x verify the axis actually shards across both
            # TensorCores; if the bundle shows a serial loop, switch this to
            # pltpu.CORE_PARALLEL.
            dimension_semantics=("parallel",),
            vmem_limit_bytes=32 * 1024 * 1024,
        ),
        cost_estimate=cost,
    )(idx2d, bdtab)


def make_bounded_integer_embedding(table, min_val: int, *, row_tile: int = 2048):
    """Factory: precomputes the block-diagonal table once (review item: don't
    rebuild `kron` on every forward call) and returns apply(value) ->
    float32 array of shape value.shape + (D,) == table[value - min_val].
    Note: apply retraces per distinct value shape (standard JAX behavior)."""
    table = jnp.asarray(table, jnp.float32)
    v, d = table.shape
    fold = _fold_factor(d)
    # Block-diagonal table (fold*V, fold*D); e.g. (128, 256) f32 = 128 KiB.
    bdtab = jax.block_until_ready(jnp.kron(jnp.eye(fold, dtype=jnp.float32), table))

    def apply(value):
        orig_shape = value.shape
        idx_flat = value.reshape(-1).astype(jnp.int32)      # (N,)
        n = idx_flat.shape[0]

        nr_raw = pl.cdiv(n, fold)                           # folded rows needed
        if nr_raw <= row_tile:
            tnr = max(8, ((nr_raw + 7) // 8) * 8)           # single block, 8-aligned
        else:
            tnr = row_tile                                  # tnr*fold indices / tile
        nr_pad = ((nr_raw + tnr - 1) // tnr) * tnr

        pad = nr_pad * fold - n
        if pad:
            # Pad with an in-range value; padded rows are sliced off below.
            idx_flat = jnp.pad(idx_flat, (0, pad), constant_values=min_val)
        idx2d = idx_flat.reshape(nr_pad, fold)

        out = _embed_pallas(idx2d, bdtab, min_val, v, fold, tnr)
        out = out.reshape(nr_pad * fold, d)[:n]
        return out.reshape(*orig_shape, d)

    return apply


if __name__ == "__main__":
    # Module config (synthetic, deterministic)
    min_val, max_val = 2, 17          # vocab size = 16
    embedding_dim = 32
    vocab = max_val - min_val + 1

    key = jax.random.PRNGKey(0)
    k_table, k_vals, k_vals2 = jax.random.split(key, 3)

    # nn.Embedding default init: N(0, 1)
    table = jax.random.normal(k_table, (vocab, embedding_dim), dtype=jnp.float32)

    embed = make_bounded_integer_embedding(table, min_val)

    # 1) Small: value shape (batch=2, seq=8), values in [min_val, max_val].
    value = jax.random.randint(k_vals, (2, 8), min_val, max_val + 1, dtype=jnp.int32)
    out = jax.block_until_ready(embed(value))
    ref = table[(value - min_val).reshape(-1)].reshape(2, 8, embedding_dim)
    assert out.shape == (2, 8, embedding_dim)
    assert jnp.allclose(out, ref, atol=1e-6, rtol=1e-6), "mismatch vs reference (small)"

    # 2) Larger input, default (single-tile) path with fold padding.
    value2 = jax.random.randint(k_vals2, (3, 700), min_val, max_val + 1, dtype=jnp.int32)
    out2 = jax.block_until_ready(embed(value2))
    ref2 = table[(value2 - min_val).reshape(-1)].reshape(3, 700, embedding_dim)
    assert out2.shape == (3, 700, embedding_dim)
    assert jnp.allclose(out2, ref2, atol=1e-6, rtol=1e-6), "mismatch vs reference (default)"

    # 3) Multi-tile path (grid > 1) with a small row_tile to exercise pipelining
    #    and padding of the final tile.
    embed_tiled = make_bounded_integer_embedding(table, min_val, row_tile=64)
    out3 = jax.block_until_ready(embed_tiled(value2))
    assert jnp.allclose(out3, ref2, atol=1e-6, rtol=1e-6), "mismatch vs reference (tiled)"

    print("KERNEL_OK")
</pallas_src>

<mosaic_0001>
module attributes {stable_mosaic.version = 11 : i64} {
  func.func @embed_kernel(%arg0: i32, %arg1: memref<8x8xi32, #tpu.memory_space<vmem>>, %arg2: memref<128x256xf32, #tpu.memory_space<vmem>>, %arg3: memref<8x256xf32, #tpu.memory_space<vmem>>) attributes {dimension_semantics = [#tpu.dimension_semantics<parallel>], iteration_bounds = array<i64: 1>, scalar_prefetch = 0 : i64, scratch_operands = 0 : i64, tpu.core_type = #tpu.core_type<tc>, window_params = [{transform_indices = @transform_0, window_bounds = array<i64: 8, 8>}, {pipeline_mode = #tpu.pipeline_mode<synchronous>, transform_indices = @transform_1, window_bounds = array<i64: 128, 256>}, {transform_indices = @transform_2, window_bounds = array<i64: 8, 256>}]} {
    %c0 = arith.constant 0 : index
    %c0_0 = arith.constant 0 : index
    %0 = vector.load %arg1[%c0, %c0_0] : memref<8x8xi32, #tpu.memory_space<vmem>>, vector<8x8xi32>
    %c2_i32 = arith.constant 2 : i32
    %1 = vector.broadcast %c2_i32 : i32 to vector<8x8xi32>
    %2 = arith.subi %0, %1 : vector<8x8xi32>
    %3 = tpu.iota {dimensions = array<i32: 1>} : vector<8x128xi32>
    %4 = vector.extract_strided_slice %2 {offsets = [0, 0], sizes = [8, 1], strides = [1, 1]} : vector<8x8xi32> to vector<8x1xi32>
    %c16_i32 = arith.constant 16 : i32
    %5 = vector.broadcast %c16_i32 : i32 to vector<8x128xi32>
    %6 = arith.cmpi sge, %3, %5 : vector<8x128xi32>
    %7 = vector.extract_strided_slice %2 {offsets = [0, 1], sizes = [8, 1], strides = [1, 1]} : vector<8x8xi32> to vector<8x1xi32>
    %c16_i32_1 = arith.constant 16 : i32
    %8 = vector.broadcast %c16_i32_1 : i32 to vector<8x1xi32>
    %9 = arith.addi %7, %8 : vector<8x1xi32>
    %10 = vector.shape_cast %9 : vector<8x1xi32> to vector<8x1xi32>
    %11 = vector.broadcast %10 : vector<8x1xi32> to vector<8x128xi32>
    %12 = vector.shape_cast %4 : vector<8x1xi32> to vector<8x1xi32>
    %13 = vector.broadcast %12 : vector<8x1xi32> to vector<8x128xi32>
    %14 = arith.select %6, %11, %13 : vector<8x128xi1>, vector<8x128xi32>
    %c32_i32 = arith.constant 32 : i32
    %15 = vector.broadcast %c32_i32 : i32 to vector<8x128xi32>
    %16 = arith.cmpi sge, %3, %15 : vector<8x128xi32>
    %17 = vector.extract_strided_slice %2 {offsets = [0, 2], sizes = [8, 1], strides = [1, 1]} : vector<8x8xi32> to vector<8x1xi32>
    %c32_i32_2 = arith.constant 32 : i32
    %18 = vector.broadcast %c32_i32_2 : i32 to vector<8x1xi32>
    %19 = arith.addi %17, %18 : vector<8x1xi32>
    %20 = vector.shape_cast %19 : vector<8x1xi32> to vector<8x1xi32>
    %21 = vector.broadcast %20 : vector<8x1xi32> to vector<8x128xi32>
    %22 = arith.select %16, %21, %14 : vector<8x128xi1>, vector<8x128xi32>
    %c48_i32 = arith.constant 48 : i32
    %23 = vector.broadcast %c48_i32 : i32 to vector<8x128xi32>
    %24 = arith.cmpi sge, %3, %23 : vector<8x128xi32>
    %25 = vector.extract_strided_slice %2 {offsets = [0, 3], sizes = [8, 1], strides = [1, 1]} : vector<8x8xi32> to vector<8x1xi32>
    %c48_i32_3 = arith.constant 48 : i32
    %26 = vector.broadcast %c48_i32_3 : i32 to vector<8x1xi32>
    %27 = arith.addi %25, %26 : vector<8x1xi32>
    %28 = vector.shape_cast %27 : vector<8x1xi32> to vector<8x1xi32>
    %29 = vector.broadcast %28 : vector<8x1xi32> to vector<8x128xi32>
    %30 = arith.select %24, %29, %22 : vector<8x128xi1>, vector<8x128xi32>
    %c64_i32 = arith.constant 64 : i32
    %31 = vector.broadcast %c64_i32 : i32 to vector<8x128xi32>
    %32 = arith.cmpi sge, %3, %31 : vector<8x128xi32>
    %33 = vector.extract_strided_slice %2 {offsets = [0, 4], sizes = [8, 1], strides = [1, 1]} : vector<8x8xi32> to vector<8x1xi32>
    %c64_i32_4 = arith.constant 64 : i32
    %34 = vector.broadcast %c64_i32_4 : i32 to vector<8x1xi32>
    %35 = arith.addi %33, %34 : vector<8x1xi32>
    %36 = vector.shape_cast %35 : vector<8x1xi32> to vector<8x1xi32>
    %37 = vector.broadcast %36 : vector<8x1xi32> to vector<8x128xi32>
    %38 = arith.select %32, %37, %30 : vector<8x128xi1>, vector<8x128xi32>
    %c80_i32 = arith.constant 80 : i32
    %39 = vector.broadcast %c80_i32 : i32 to vector<8x128xi32>
    %40 = arith.cmpi sge, %3, %39 : vector<8x128xi32>
    %41 = vector.extract_strided_slice %2 {offsets = [0, 5], sizes = [8, 1], strides = [1, 1]} : vector<8x8xi32> to vector<8x1xi32>
    %c80_i32_5 = arith.constant 80 : i32
    %42 = vector.broadcast %c80_i32_5 : i32 to vector<8x1xi32>
    %43 = arith.addi %41, %42 : vector<8x1xi32>
    %44 = vector.shape_cast %43 : vector<8x1xi32> to vector<8x1xi32>
    %45 = vector.broadcast %44 : vector<8x1xi32> to vector<8x128xi32>
    %46 = arith.select %40, %45, %38 : vector<8x128xi1>, vector<8x128xi32>
    %c96_i32 = arith.constant 96 : i32
    %47 = vector.broadcast %c96_i32 : i32 to vector<8x128xi32>
    %48 = arith.cmpi sge, %3, %47 : vector<8x128xi32>
    %49 = vector.extract_strided_slice %2 {offsets = [0, 6], sizes = [8, 1], strides = [1, 1]} : vector<8x8xi32> to vector<8x1xi32>
    %c96_i32_6 = arith.constant 96 : i32
    %50 = vector.broadcast %c96_i32_6 : i32 to vector<8x1xi32>
    %51 = arith.addi %49, %50 : vector<8x1xi32>
    %52 = vector.shape_cast %51 : vector<8x1xi32> to vector<8x1xi32>
    %53 = vector.broadcast %52 : vector<8x1xi32> to vector<8x128xi32>
    %54 = arith.select %48, %53, %46 : vector<8x128xi1>, vector<8x128xi32>
    %c112_i32 = arith.constant 112 : i32
    %55 = vector.broadcast %c112_i32 : i32 to vector<8x128xi32>
    %56 = arith.cmpi sge, %3, %55 : vector<8x128xi32>
    %57 = vector.extract_strided_slice %2 {offsets = [0, 7], sizes = [8, 1], strides = [1, 1]} : vector<8x8xi32> to vector<8x1xi32>
    %c112_i32_7 = arith.constant 112 : i32
    %58 = vector.broadcast %c112_i32_7 : i32 to vector<8x1xi32>
    %59 = arith.addi %57, %58 : vector<8x1xi32>
    %60 = vector.shape_cast %59 : vector<8x1xi32> to vector<8x1xi32>
    %61 = vector.broadcast %60 : vector<8x1xi32> to vector<8x128xi32>
    %62 = arith.select %56, %61, %54 : vector<8x128xi1>, vector<8x128xi32>
    %63 = arith.cmpi eq, %3, %62 : vector<8x128xi32>
    %64 = arith.extui %63 : vector<8x128xi1> to vector<8x128xi32>
    %65 = arith.sitofp %64 : vector<8x128xi32> to vector<8x128xf32>
    %c0_8 = arith.constant 0 : index
    %c0_9 = arith.constant 0 : index
    %66 = vector.load %arg2[%c0_8, %c0_9] : memref<128x256xf32, #tpu.memory_space<vmem>>, vector<128x256xf32>
    %cst = arith.constant dense<0.000000e+00> : vector<8x256xf32>
    %67 = tpu.matmul %65, %66, %cst {dimension_numbers = #tpu.dot_dimension_numbers<[1], [0], [0], [1], [0, 0, 1, 1], [], []>, precision = #tpu.contract_precision<fp32>} : vector<8x128xf32>, vector<128x256xf32>, vector<8x256xf32> -> vector<8x256xf32>
    %c0_10 = arith.constant 0 : index
    %c0_11 = arith.constant 0 : index
    %68 = vector.load %arg3[%c0_10, %c0_11] : memref<8x256xf32, #tpu.memory_space<vmem>>, vector<8x256xf32>
    tpu.vector_store %arg3[%c0_10, %c0_11], %67 {strides = array<i32>} : memref<8x256xf32, #tpu.memory_space<vmem>>, vector<8x256xf32>,
    return
  }
  func.func @transform_0(%arg0: i32) -> (i32, i32) {
    %c0_i32 = arith.constant 0 : i32
    %c0_i32_0 = arith.constant 0 : i32
    return %arg0, %c0_i32 : i32, i32
  }
  func.func @transform_1(%arg0: i32) -> (i32, i32) {
    %c0_i32 = arith.constant 0 : i32
    %c0_i32_0 = arith.constant 0 : i32
    %c0_i32_1 = arith.constant 0 : i32
    return %c0_i32, %c0_i32_0 : i32, i32
  }
  func.func @transform_2(%arg0: i32) -> (i32, i32) {
    %c0_i32 = arith.constant 0 : i32
    %c0_i32_0 = arith.constant 0 : i32
    return %arg0, %c0_i32 : i32, i32
  }
}

</mosaic_0001>

<llo_original>
// kernel: tpu_custom_call.1
$region0: #{tpu_custom_call.1}
  #allocation0 [shape = 'u32[]', space=smem, size = 0x4, offset = 0x4, fixed_abs, tag = 'smem constant byte address 0x4 - core index']
  #allocation1 [shape = 'u32[144,128]{1,0:T(1,128)}', space=vmem, size = 0x12000, scoped, tag = 'internal scratch']
  %s0 = inlined_call_operand.hbm [shape: s32[8,8], index: 0, kind: input, shape index: {}]
  %s1 = inlined_call_operand.hbm [shape: f32[128,256], index: 1, kind: input, shape index: {}]
  %s2 = inlined_call_operand.hbm [shape: f32[8,256], index: 2, kind: output, shape index: {}]
  %s3 = sld [smem:[#allocation0]]
  $region26: #{tpu_custom_call.1} parent=0
    _
  %s5 = ssub.s32 1, %s3
  %s6 = scalar_select 0, %s5, %s3
  $region1: #{tpu_custom_call.1} parent=0
    #allocation2 [shape = 'u8[4096]{0}', space=vmem, size = 0x1000, scoped, tag = 'input window, operand 0, single buffered']
    #allocation3 [shape = 's32[1]{0}', space=sflag, size = 0x4, scoped, tag = 'scoped memory for tpu_custom_call.1']
    #allocation4 [shape = 's32[1]{0}', space=sflag, size = 0x4, scoped, tag = 'scoped memory for tpu_custom_call.1']
    #allocation5 [shape = 'u8[131072]{0}', space=vmem, size = 0x20000, scoped, tag = 'input window, operand 1, single buffered']
    #allocation6 [shape = 's32[1]{0}', space=sflag, size = 0x4, scoped, tag = 'scoped memory for tpu_custom_call.1']
    #allocation7 [shape = 'u8[8192]{0}', space=vmem, size = 0x2000, scoped, tag = 'output window, operand 0, single buffered']
    %7 = vsyncpa [#allocation3], 0
    %8 = vsyncpa [#allocation6], 0
    %9 = vsyncpa [#allocation4], 0
    // Predicated region
    $region2: #{tpu_custom_call.1} parent=1 // pred_check
      _
    $region3: #{tpu_custom_call.1} parent=1 // pred_check_branch
      %11 = sbr.rel (0) target = $region5
    $region4: #{tpu_custom_call.1} parent=1 // pred_region
      %s13 = ssub.s32 128, 128
      %14 = vsyncadd [#allocation3], %s13
      %s16 = sshll.u32 [#allocation2], 4
      %s17 = int_to_ptr.vmem [resolvable:$true] %s16
      %19 = dma.hbm_to_vmem [thread:$0]  %s0, 128, %s17, [#allocation3]
    $region5: #{tpu_custom_call.1} parent=1 // pred_fallthru
      _
    // Predicated region
    $region6: #{tpu_custom_call.1} parent=1 // pred_check
      _
    $region7: #{tpu_custom_call.1} parent=1 // pred_check_branch
      %21 = sbr.rel (0) target = $region9
    $region8: #{tpu_custom_call.1} parent=1 // pred_region
      %s23 = ssub.s32 4096, 4096
      %24 = vsyncadd [#allocation6], %s23
      %s25 = sshll.u32 [#allocation5], 4
      %s26 = int_to_ptr.vmem [resolvable:$true] %s25
      %31 = dma.hbm_to_vmem [thread:$0]  %s1, 4096, %s26, [#allocation6], 256, 256, 16
    $region9: #{tpu_custom_call.1} parent=1 // pred_fallthru
      _
    // Predicated region
    $region10: #{tpu_custom_call.1} parent=1 // pred_check
      _
    $region11: #{tpu_custom_call.1} parent=1 // pred_check_branch
      %33 = sbr.rel (0) target = $region13
    $region12: #{tpu_custom_call.1} parent=1 // pred_region
      %34 = dma.done [#allocation3], 128
    $region13: #{tpu_custom_call.1} parent=1 // pred_fallthru
      _
    // Predicated region
    $region14: #{tpu_custom_call.1} parent=1 // pred_check
      _
    $region15: #{tpu_custom_call.1} parent=1 // pred_check_branch
      %36 = sbr.rel (0) target = $region17
    $region16: #{tpu_custom_call.1} parent=1 // pred_region
      %37 = dma.done [#allocation6], 4096
    $region17: #{tpu_custom_call.1} parent=1 // pred_fallthru
      _
    %v38 = vld [vmem:[#allocation2] sm:$0xff]
    %v39 = vsub.s32 %v38, 2
    %v40 = vlaneseq
    %v41 = vand.u32 %v40, 127
    %vm42 = vcmp.ge.s32.totalorder %v41, 16
    %v43 = vadd.s32 %v39, 16
    %44 = vset.pattern.permute.xlu0 1
    %45 = vperm.xlu0 %44, %v43
    %v46 = vpop.permute.xlu0 %45
    %47 = vset.pattern.permute.xlu0 0
    %48 = vperm.xlu0 %47, %v39
    %v49 = vpop.permute.xlu0 %48
    %v50 = vsel %vm42, %v46, %v49
    %vm51 = vcmp.ge.s32.totalorder %v41, 32
    %v52 = vadd.s32 %v39, 32
    %53 = vset.pattern.permute.xlu0 2
    %54 = vperm.xlu0 %53, %v52
    %v55 = vpop.permute.xlu0 %54
    %v56 = vsel %vm51, %v55, %v50
    %vm57 = vcmp.ge.s32.totalorder %v41, 48
    %v58 = vadd.s32 %v39, 48
    %59 = vset.pattern.permute.xlu0 3
    %60 = vperm.xlu0 %59, %v58
    %v61 = vpop.permute.xlu0 %60
    %v62 = vsel %vm57, %v61, %v56
    %vm63 = vcmp.ge.s32.totalorder %v41, 64
    %v64 = vadd.s32 %v39, 64
    %65 = vset.pattern.permute.xlu0 4
    %66 = vperm.xlu0 %65, %v64
    %v67 = vpop.permute.xlu0 %66
    %v68 = vsel %vm63, %v67, %v62
    %vm69 = vcmp.ge.s32.totalorder %v41, 80
    %v70 = vadd.s32 %v39, 80
    %71 = vset.pattern.permute.xlu0 5
    %72 = vperm.xlu0 %71, %v70
    %v73 = vpop.permute.xlu0 %72
    %v74 = vsel %vm69, %v73, %v68
    %vm75 = vcmp.ge.s32.totalorder %v41, 96
    %v76 = vadd.s32 %v39, 96
    %77 = vset.pattern.permute.xlu0 6
    %78 = vperm.xlu0 %77, %v76
    %v79 = vpop.permute.xlu0 %78
    %v80 = vsel %vm75, %v79, %v74
    %vm81 = vcmp.ge.s32.totalorder %v41, 112
    %v82 = vadd.s32 %v39, 112
    %83 = vset.pattern.permute.xlu0 7
    %84 = vperm.xlu0 %83, %v82
    %v85 = vpop.permute.xlu0 %84
    %v86 = vsel %vm81, %v85, %v80
    %vm87 = vcmp.eq.s32.totalorder %v41, %v86
    %v88 = vsel %vm87, 1, 0
    %v89 = vcvt.s32.f32 %v88
    %v90 = vld [vmem:[#allocation5] sm:$0xff]
    %v91 = vld [vmem:[#allocation5 + $0x8] sm:$0xff]
    %v92 = vld [vmem:[#allocation5 + $0x10] sm:$0xff]
    %v93 = vld [vmem:[#allocation5 + $0x18] sm:$0xff]
    %v94 = vld [vmem:[#allocation5 + $0x20] sm:$0xff]
    %v95 = vld [vmem:[#allocation5 + $0x28] sm:$0xff]
    %v96 = vld [vmem:[#allocation5 + $0x30] sm:$0xff]
    %v97 = vld [vmem:[#allocation5 + $0x38] sm:$0xff]
    %v98 = vld [vmem:[#allocation5 + $0x40] sm:$0xff]
    %v99 = vld [vmem:[#allocation5 + $0x48] sm:$0xff]
    %v100 = vld [vmem:[#allocation5 + $0x50] sm:$0xff]
    %v101 = vld [vmem:[#allocation5 + $0x58] sm:$0xff]
    %v102 = vld [vmem:[#allocation5 + $0x60] sm:$0xff]
    %v103 = vld [vmem:[#allocation5 + $0x68] sm:$0xff]
    %v104 = vld [vmem:[#allocation5 + $0x70] sm:$0xff]
    %v105 = vld [vmem:[#allocation5 + $0x78] sm:$0xff]
    %v106 = vld [vmem:[#allocation5 + $0x80] sm:$0xff]
    %v107 = vld [vmem:[#allocation5 + $0x88] sm:$0xff]
    %v108 = vld [vmem:[#allocation5 + $0x90] sm:$0xff]
    %v109 = vld [vmem:[#allocation5 + $0x98] sm:$0xff]
    %v110 = vld [vmem:[#allocation5 + $0xa0] sm:$0xff]
    %v111 = vld [vmem:[#allocation5 + $0xa8] sm:$0xff]
    %v112 = vld [vmem:[#allocation5 + $0xb0] sm:$0xff]
    %v113 = vld [vmem:[#allocation5 + $0xb8] sm:$0xff]
    %v114 = vld [vmem:[#allocation5 + $0xc0] sm:$0xff]
    %v115 = vld [vmem:[#allocation5 + $0xc8] sm:$0xff]
    %v116 = vld [vmem:[#allocation5 + $0xd0] sm:$0xff]
    %v117 = vld [vmem:[#allocation5 + $0xd8] sm:$0xff]
    %v118 = vld [vmem:[#allocation5 + $0xe0] sm:$0xff]
    %v119 = vld [vmem:[#allocation5 + $0xe8] sm:$0xff]
    %v120 = vld [vmem:[#allocation5 + $0xf0] sm:$0xff]
    %v121 = vld [vmem:[#allocation5 + $0xf8] sm:$0xff]
    %v122 = vand.u32 %v91, 4294901760
    %123 = vmatprep.subr.mxu0 %v122
    %v124 = vand.u32 %v90, 4294901760
    %125 = vmatpush1.msra.mxu0 %v124
    %v126 = vand.u32 %v93, 4294901760
    %127 = vmatprep.subr.mxu0 %v126
    %v128 = vand.u32 %v92, 4294901760
    %129 = vmatpush1.msra.mxu0 %v128
    %v130 = vand.u32 %v95, 4294901760
    %131 = vmatprep.subr.mxu0 %v130
    %v132 = vand.u32 %v94, 4294901760
    %133 = vmatpush1.msra.mxu0 %v132
    %v134 = vand.u32 %v97, 4294901760
    %135 = vmatprep.subr.mxu0 %v134
    %v136 = vand.u32 %v96, 4294901760
    %137 = vmatpush1.msra.mxu0 %v136
    %v138 = vand.u32 %v99, 4294901760
    %139 = vmatprep.subr.mxu0 %v138
    %v140 = vand.u32 %v98, 4294901760
    %141 = vmatpush1.msra.mxu0 %v140
    %v142 = vand.u32 %v101, 4294901760
    %143 = vmatprep.subr.mxu0 %v142
    %v144 = vand.u32 %v100, 4294901760
    %145 = vmatpush1.msra.mxu0 %v144
    %v146 = vand.u32 %v103, 4294901760
    %147 = vmatprep.subr.mxu0 %v146
    %v148 = vand.u32 %v102, 4294901760
    %149 = vmatpush1.msra.mxu0 %v148
    %v150 = vand.u32 %v105, 4294901760
    %151 = vmatprep.subr.mxu0 %v150
    %v152 = vand.u32 %v104, 4294901760
    %153 = vmatpush1.msra.mxu0 %v152
    %v154 = vand.u32 %v107, 4294901760
    %155 = vmatprep.subr.mxu0 %v154
    %v156 = vand.u32 %v106, 4294901760
    %157 = vmatpush1.msra.mxu0 %v156
    %v158 = vand.u32 %v109, 4294901760
    %159 = vmatprep.subr.mxu0 %v158
    %v160 = vand.u32 %v108, 4294901760
    %161 = vmatpush1.msra.mxu0 %v160
    %v162 = vand.u32 %v111, 4294901760
    %163 = vmatprep.subr.mxu0 %v162
    %v164 = vand.u32 %v110, 4294901760
    %165 = vmatpush1.msra.mxu0 %v164
    %v166 = vand.u32 %v113, 4294901760
    %167 = vmatprep.subr.mxu0 %v166
    %v168 = vand.u32 %v112, 4294901760
    %169 = vmatpush1.msra.mxu0 %v168
    %v170 = vand.u32 %v115, 4294901760
    %171 = vmatprep.subr.mxu0 %v170
    %v172 = vand.u32 %v114, 4294901760
    %173 = vmatpush1.msra.mxu0 %v172
    %v174 = vand.u32 %v117, 4294901760
    %175 = vmatprep.subr.mxu0 %v174
    %v176 = vand.u32 %v116, 4294901760
    %177 = vmatpush1.msra.mxu0 %v176
    %v178 = vand.u32 %v119, 4294901760
    %179 = vmatprep.subr.mxu0 %v178
    %v180 = vand.u32 %v118, 4294901760
    %181 = vmatpush1.msra.mxu0 %v180
    %v182 = vand.u32 %v121, 4294901760
    %183 = vmatprep.subr.mxu0 %v182
    %v184 = vand.u32 %v120, 4294901760
    %185 = vmatpush1.msra.mxu0 %v184
    %186 = vmatprep.subr.mxu0 0.0
    %187 = vmatpush1.msra.mxu0 0.0
    %188 = vmatprep.subr.mxu0 0.0
    %189 = vmatpush1.msra.mxu0 0.0
    %190 = vmatprep.subr.mxu0 0.0
    %191 = vmatpush1.msra.mxu0 0.0
    %192 = vmatprep.subr.mxu0 0.0
    %193 = vmatpush1.msra.mxu0 0.0
    %194 = vmatprep.subr.mxu0 0.0
    %195 = vmatpush1.msra.mxu0 0.0
    %196 = vmatprep.subr.mxu0 0.0
    %197 = vmatpush1.msra.mxu0 0.0
    %198 = vmatprep.subr.mxu0 0.0
    %199 = vmatpush1.msra.mxu0 0.0
    %200 = vmatprep.subr.mxu0 0.0
    %201 = vmatpush1.msra.mxu0 0.0
    %202 = vmatprep.subr.mxu0 0.0
    %203 = vmatpush1.msra.mxu0 0.0
    %204 = vmatprep.subr.mxu0 0.0
    %205 = vmatpush1.msra.mxu0 0.0
    %206 = vmatprep.subr.mxu0 0.0
    %207 = vmatpush1.msra.mxu0 0.0
    %208 = vmatprep.subr.mxu0 0.0
    %209 = vmatpush1.msra.mxu0 0.0
    %210 = vmatprep.subr.mxu0 0.0
    %211 = vmatpush1.msra.mxu0 0.0
    %212 = vmatprep.subr.mxu0 0.0
    %213 = vmatpush1.msra.mxu0 0.0
    %214 = vmatprep.subr.mxu0 0.0
    %215 = vmatpush1.msra.mxu0 0.0
    %216 = vmatprep.subr.mxu0 0.0
    %217 = vmatpush1.msra.mxu0 0.0
    %218 = vmatprep.mubr.f32.mxu0 0.0
    %v219 = vand.u32 %v89, 4294901760
    %v220 = vsub.f32 %v89, %v219
    %v221 = vand.u32 %v220, 4294901760
    %v222 = vsub.f32 %v220, %v221
    %v223 = vand.u32 %v222, 4294901760
    %224 = vmatmul.mubr.f32.gmra.mrb[0].mxu0 %v223
    %v225 = vpop.f32.mrb[0].mxu0
    %v226 = vadd.f32 0.0, %v225
    %v227 = vpop.f32.mrb[0].mxu0
    %v228 = vadd.f32 0.0, %v227
    %229 = vdwg.mxu0
    %v230 = vand.u32 %v91, 4294901760
    %v231 = vsub.f32 %v91, %v230
    %v232 = vand.u32 %v231, 4294901760
    %v233 = vsub.f32 %v231, %v232
    %v234 = vand.u32 %v233, 4294901760
    %235 = vmatprep.subr.mxu0 %v234
    %v236 = vand.u32 %v90, 4294901760
    %v237 = vsub.f32 %v90, %v236
    %v238 = vand.u32 %v237, 4294901760
    %v239 = vsub.f32 %v237, %v238
    %v240 = vand.u32 %v239, 4294901760
    %241 = vmatpush1.msra.mxu0 %v240
    %v242 = vand.u32 %v93, 4294901760
    %v243 = vsub.f32 %v93, %v242
    %v244 = vand.u32 %v243, 4294901760
    %v245 = vsub.f32 %v243, %v244
    %v246 = vand.u32 %v245, 4294901760
    %247 = vmatprep.subr.mxu0 %v246
    %v248 = vand.u32 %v92, 4294901760
    %v249 = vsub.f32 %v92, %v248
    %v250 = vand.u32 %v249, 4294901760
    %v251 = vsub.f32 %v249, %v250
    %v252 = vand.u32 %v251, 4294901760
    %253 = vmatpush1.msra.mxu0 %v252
    %v254 = vand.u32 %v95, 4294901760
    %v255 = vsub.f32 %v95, %v254
    %v256 = vand.u32 %v255, 4294901760
    %v257 = vsub.f32 %v255, %v256
    %v258 = vand.u32 %v257, 4294901760
    %259 = vmatprep.subr.mxu0 %v258
    %v260 = vand.u32 %v94, 4294901760
    %v261 = vsub.f32 %v94, %v260
    %v262 = vand.u32 %v261, 4294901760
    %v263 = vsub.f32 %v261, %v262
    %v264 = vand.u32 %v263, 4294901760
    %265 = vmatpush1.msra.mxu0 %v264
    %v266 = vand.u32 %v97, 4294901760
    %v267 = vsub.f32 %v97, %v266
    %v268 = vand.u32 %v267, 4294901760
    %v269 = vsub.f32 %v267, %v268
    %v270 = vand.u32 %v269, 4294901760
    %271 = vmatprep.subr.mxu0 %v270
    %v272 = vand.u32 %v96, 4294901760
    %v273 = vsub.f32 %v96, %v272
    %v274 = vand.u32 %v273, 4294901760
    %v275 = vsub.f32 %v273, %v274
    %v276 = vand.u32 %v275, 4294901760
    %277 = vmatpush1.msra.mxu0 %v276
    %v278 = vand.u32 %v99, 4294901760
    %v279 = vsub.f32 %v99, %v278
    %v280 = vand.u32 %v279, 4294901760
    %v281 = vsub.f32 %v279, %v280
    %v282 = vand.u32 %v281, 4294901760
    %283 = vmatprep.subr.mxu0 %v282
    %v284 = vand.u32 %v98, 4294901760
    %v285 = vsub.f32 %v98, %v284
    %v286 = vand.u32 %v285, 4294901760
    %v287 = vsub.f32 %v285, %v286
    %v288 = vand.u32 %v287, 4294901760
    %289 = vmatpush1.msra.mxu0 %v288
    %v290 = vand.u32 %v101, 4294901760
    %v291 = vsub.f32 %v101, %v290
    %v292 = vand.u32 %v291, 4294901760
    %v293 = vsub.f32 %v291, %v292
    %v294 = vand.u32 %v293, 4294901760
    %295 = vmatprep.subr.mxu0 %v294
    %v296 = vand.u32 %v100, 4294901760
    %v297 = vsub.f32 %v100, %v296
    %v298 = vand.u32 %v297, 4294901760
    %v299 = vsub.f32 %v297, %v298
    %v300 = vand.u32 %v299, 4294901760
    %301 = vmatpush1.msra.mxu0 %v300
    %v302 = vand.u32 %v103, 4294901760
    %v303 = vsub.f32 %v103, %v302
    %v304 = vand.u32 %v303, 4294901760
    %v305 = vsub.f32 %v303, %v304
    %v306 = vand.u32 %v305, 4294901760
    %307 = vmatprep.subr.mxu0 %v306
    %v308 = vand.u32 %v102, 4294901760
    %v309 = vsub.f32 %v102, %v308
    %v310 = vand.u32 %v309, 4294901760
    %v311 = vsub.f32 %v309, %v310
    %v312 = vand.u32 %v311, 4294901760
    %313 = vmatpush1.msra.mxu0 %v312
    %v314 = vand.u32 %v105, 4294901760
    %v315 = vsub.f32 %v105, %v314
    %v316 = vand.u32 %v315, 4294901760
    %v317 = vsub.f32 %v315, %v316
    %v318 = vand.u32 %v317, 4294901760
    %319 = vmatprep.subr.mxu0 %v318
    %v320 = vand.u32 %v104, 4294901760
    %v321 = vsub.f32 %v104, %v320
    %v322 = vand.u32 %v321, 4294901760
    %v323 = vsub.f32 %v321, %v322
    %v324 = vand.u32 %v323, 4294901760
    %325 = vmatpush1.msra.mxu0 %v324
    %v326 = vand.u32 %v107, 4294901760
    %v327 = vsub.f32 %v107, %v326
    %v328 = vand.u32 %v327, 4294901760
    %v329 = vsub.f32 %v327, %v328
    %v330 = vand.u32 %v329, 4294901760
    %331 = vmatprep.subr.mxu0 %v330
    %v332 = vand.u32 %v106, 4294901760
    %v333 = vsub.f32 %v106, %v332
    %v334 = vand.u32 %v333, 4294901760
    %v335 = vsub.f32 %v333, %v334
    %v336 = vand.u32 %v335, 4294901760
    %337 = vmatpush1.msra.mxu0 %v336
    %v338 = vand.u32 %v109, 4294901760
    %v339 = vsub.f32 %v109, %v338
    %v340 = vand.u32 %v339, 4294901760
    %v341 = vsub.f32 %v339, %v340
    %v342 = vand.u32 %v341, 4294901760
    %343 = vmatprep.subr.mxu0 %v342
    %v344 = vand.u32 %v108, 4294901760
    %v345 = vsub.f32 %v108, %v344
    %v346 = vand.u32 %v345, 4294901760
    %v347 = vsub.f32 %v345, %v346
    %v348 = vand.u32 %v347, 4294901760
    %349 = vmatpush1.msra.mxu0 %v348
    %v350 = vand.u32 %v111, 4294901760
    %v351 = vsub.f32 %v111, %v350
    %v352 = vand.u32 %v351, 4294901760
    %v353 = vsub.f32 %v351, %v352
    %v354 = vand.u32 %v353, 4294901760
    %355 = vmatprep.subr.mxu0 %v354
    %v356 = vand.u32 %v110, 4294901760
    %v357 = vsub.f32 %v110, %v356
    %v358 = vand.u32 %v357, 4294901760
    %v359 = vsub.f32 %v357, %v358
    %v360 = vand.u32 %v359, 4294901760
    %361 = vmatpush1.msra.mxu0 %v360
    %v362 = vand.u32 %v113, 4294901760
    %v363 = vsub.f32 %v113, %v362
    %v364 = vand.u32 %v363, 4294901760
    %v365 = vsub.f32 %v363, %v364
    %v366 = vand.u32 %v365, 4294901760
    %367 = vmatprep.subr.mxu0 %v366
    %v368 = vand.u32 %v112, 4294901760
    %v369 = vsub.f32 %v112, %v368
    %v370 = vand.u32 %v369, 4294901760
    %v371 = vsub.f32 %v369, %v370
    %v372 = vand.u32 %v371, 4294901760
    %373 = vmatpush1.msra.mxu0 %v372
    %v374 = vand.u32 %v115, 4294901760
    %v375 = vsub.f32 %v115, %v374
    %v376 = vand.u32 %v375, 4294901760
    %v377 = vsub.f32 %v375, %v376
    %v378 = vand.u32 %v377, 4294901760
    %379 = vmatprep.subr.mxu0 %v378
    %v380 = vand.u32 %v114, 4294901760
    %v381 = vsub.f32 %v114, %v380
    %v382 = vand.u32 %v381, 4294901760
    %v383 = vsub.f32 %v381, %v382
    %v384 = vand.u32 %v383, 4294901760
    %385 = vmatpush1.msra.mxu0 %v384
    %v386 = vand.u32 %v117, 4294901760
    %v387 = vsub.f32 %v117, %v386
    %v388 = vand.u32 %v387, 4294901760
    %v389 = vsub.f32 %v387, %v388
    %v390 = vand.u32 %v389, 4294901760
    %391 = vmatprep.subr.mxu0 %v390
    %v392 = vand.u32 %v116, 4294901760
    %v393 = vsub.f32 %v116, %v392
    %v394 = vand.u32 %v393, 4294901760
    %v395 = vsub.f32 %v393, %v394
    %v396 = vand.u32 %v395, 4294901760
    %397 = vmatpush1.msra.mxu0 %v396
    %v398 = vand.u32 %v119, 4294901760
    %v399 = vsub.f32 %v119, %v398
    %v400 = vand.u32 %v399, 4294901760
    %v401 = vsub.f32 %v399, %v400
    %v402 = vand.u32 %v401, 4294901760
    %403 = vmatprep.subr.mxu0 %v402
    %v404 = vand.u32 %v118, 4294901760
    %v405 = vsub.f32 %v118, %v404
    %v406 = vand.u32 %v405, 4294901760
    %v407 = vsub.f32 %v405, %v406
    %v408 = vand.u32 %v407, 4294901760
    %409 = vmatpush1.msra.mxu0 %v408
    %v410 = vand.u32 %v121, 4294901760
    %v411 = vsub.f32 %v121, %v410
    %v412 = vand.u32 %v411, 4294901760
    %v413 = vsub.f32 %v411, %v412
    %v414 = vand.u32 %v413, 4294901760
    %415 = vmatprep.subr.mxu0 %v414
    %v416 = vand.u32 %v120, 4294901760
    %v417 = vsub.f32 %v120, %v416
    %v418 = vand.u32 %v417, 4294901760
    %v419 = vsub.f32 %v417, %v418
    %v420 = vand.u32 %v419, 4294901760
    %421 = vmatpush1.msra.mxu0 %v420
    %422 = vmatprep.subr.mxu0 0.0
    %423 = vmatpush1.msra.mxu0 0.0
    %424 = vmatprep.subr.mxu0 0.0
    %425 = vmatpush1.msra.mxu0 0.0
    %426 = vmatprep.subr.mxu0 0.0
    %427 = vmatpush1.msra.mxu0 0.0
    %428 = vmatprep.subr.mxu0 0.0
    %429 = vmatpush1.msra.mxu0 0.0
    %430 = vmatprep.subr.mxu0 0.0
    %431 = vmatpush1.msra.mxu0 0.0
    %432 = vmatprep.subr.mxu0 0.0
    %433 = vmatpush1.msra.mxu0 0.0
    %434 = vmatprep.subr.mxu0 0.0
    %435 = vmatpush1.msra.mxu0 0.0
    %436 = vmatprep.subr.mxu0 0.0
    %437 = vmatpush1.msra.mxu0 0.0
    %438 = vmatprep.subr.mxu0 0.0
    %439 = vmatpush1.msra.mxu0 0.0
    %440 = vmatprep.subr.mxu0 0.0
    %441 = vmatpush1.msra.mxu0 0.0
    %442 = vmatprep.subr.mxu0 0.0
    %443 = vmatpush1.msra.mxu0 0.0
    %444 = vmatprep.subr.mxu0 0.0
    %445 = vmatpush1.msra.mxu0 0.0
    %446 = vmatprep.subr.mxu0 0.0
    %447 = vmatpush1.msra.mxu0 0.0
    %448 = vmatprep.subr.mxu0 0.0
    %449 = vmatpush1.msra.mxu0 0.0
    %450 = vmatprep.subr.mxu0 0.0
    %451 = vmatpush1.msra.mxu0 0.0
    %452 = vmatprep.subr.mxu0 0.0
    %453 = vmatpush1.msra.mxu0 0.0
    %454 = vmatprep.mubr.f32.mxu0 0.0
    %v455 = vand.u32 %v89, 4294901760
    %456 = vmatmul.mubr.f32.gmra.mrb[0].mxu0 %v455
    %v457 = vpop.f32.mrb[0].mxu0
    %v458 = vadd.f32 %v226, %v457
    %v459 = vpop.f32.mrb[0].mxu0
    %v460 = vadd.f32 %v228, %v459
    %461 = vdwg.mxu0
    %v462 = vand.u32 %v91, 4294901760
    %v463 = vsub.f32 %v91, %v462
    %464 = vmatprep.subr.mxu0 %v463
    %v465 = vand.u32 %v90, 4294901760
    %v466 = vsub.f32 %v90, %v465
    %467 = vmatpush1.msra.mxu0 %v466
    %v468 = vand.u32 %v93, 4294901760
    %v469 = vsub.f32 %v93, %v468
    %470 = vmatprep.subr.mxu0 %v469
    %v471 = vand.u32 %v92, 4294901760
    %v472 = vsub.f32 %v92, %v471
    %473 = vmatpush1.msra.mxu0 %v472
    %v474 = vand.u32 %v95, 4294901760
    %v475 = vsub.f32 %v95, %v474
    %476 = vmatprep.subr.mxu0 %v475
    %v477 = vand.u32 %v94, 4294901760
    %v478 = vsub.f32 %v94, %v477
    %479 = vmatpush1.msra.mxu0 %v478
    %v480 = vand.u32 %v97, 4294901760
    %v481 = vsub.f32 %v97, %v480
    %482 = vmatprep.subr.mxu0 %v481
    %v483 = vand.u32 %v96, 4294901760
    %v484 = vsub.f32 %v96, %v483
    %485 = vmatpush1.msra.mxu0 %v484
    %v486 = vand.u32 %v99, 4294901760
    %v487 = vsub.f32 %v99, %v486
    %488 = vmatprep.subr.mxu0 %v487
    %v489 = vand.u32 %v98, 4294901760
    %v490 = vsub.f32 %v98, %v489
    %491 = vmatpush1.msra.mxu0 %v490
    %v492 = vand.u32 %v101, 4294901760
    %v493 = vsub.f32 %v101, %v492
    %494 = vmatprep.subr.mxu0 %v493
    %v495 = vand.u32 %v100, 4294901760
    %v496 = vsub.f32 %v100, %v495
    %497 = vmatpush1.msra.mxu0 %v496
    %v498 = vand.u32 %v103, 4294901760
    %v499 = vsub.f32 %v103, %v498
    %500 = vmatprep.subr.mxu0 %v499
    %v501 = vand.u32 %v102, 4294901760
    %v502 = vsub.f32 %v102, %v501
    %503 = vmatpush1.msra.mxu0 %v502
    %v504 = vand.u32 %v105, 4294901760
    %v505 = vsub.f32 %v105, %v504
    %506 = vmatprep.subr.mxu0 %v505
    %v507 = vand.u32 %v104, 4294901760
    %v508 = vsub.f32 %v104, %v507
    %509 = vmatpush1.msra.mxu0 %v508
    %v510 = vand.u32 %v107, 4294901760
    %v511 = vsub.f32 %v107, %v510
    %512 = vmatprep.subr.mxu0 %v511
    %v513 = vand.u32 %v106, 4294901760
    %v514 = vsub.f32 %v106, %v513
    %515 = vmatpush1.msra.mxu0 %v514
    %v516 = vand.u32 %v109, 4294901760
    %v517 = vsub.f32 %v109, %v516
    %518 = vmatprep.subr.mxu0 %v517
    %v519 = vand.u32 %v108, 4294901760
    %v520 = vsub.f32 %v108, %v519
    %521 = vmatpush1.msra.mxu0 %v520
    %v522 = vand.u32 %v111, 4294901760
    %v523 = vsub.f32 %v111, %v522
    %524 = vmatprep.subr.mxu0 %v523
    %v525 = vand.u32 %v110, 4294901760
    %v526 = vsub.f32 %v110, %v525
    %527 = vmatpush1.msra.mxu0 %v526
    %v528 = vand.u32 %v113, 4294901760
    %v529 = vsub.f32 %v113, %v528
    %530 = vmatprep.subr.mxu0 %v529
    %v531 = vand.u32 %v112, 4294901760
    %v532 = vsub.f32 %v112, %v531
    %533 = vmatpush1.msra.mxu0 %v532
    %v534 = vand.u32 %v115, 4294901760
    %v535 = vsub.f32 %v115, %v534
    %536 = vmatprep.subr.mxu0 %v535
    %v537 = vand.u32 %v114, 4294901760
    %v538 = vsub.f32 %v114, %v537
    %539 = vmatpush1.msra.mxu0 %v538
    %v540 = vand.u32 %v117, 4294901760
    %v541 = vsub.f32 %v117, %v540
    %542 = vmatprep.subr.mxu0 %v541
    %v543 = vand.u32 %v116, 4294901760
    %v544 = vsub.f32 %v116, %v543
    %545 = vmatpush1.msra.mxu0 %v544
    %v546 = vand.u32 %v119, 4294901760
    %v547 = vsub.f32 %v119, %v546
    %548 = vmatprep.subr.mxu0 %v547
    %v549 = vand.u32 %v118, 4294901760
    %v550 = vsub.f32 %v118, %v549
    %551 = vmatpush1.msra.mxu0 %v550
    %v552 = vand.u32 %v121, 4294901760
    %v553 = vsub.f32 %v121, %v552
    %554 = vmatprep.subr.mxu0 %v553
    %v555 = vand.u32 %v120, 4294901760
    %v556 = vsub.f32 %v120, %v555
    %557 = vmatpush1.msra.mxu0 %v556
    %558 = vmatprep.subr.mxu0 0.0
    %559 = vmatpush1.msra.mxu0 0.0
    %560 = vmatprep.subr.mxu0 0.0
    %561 = vmatpush1.msra.mxu0 0.0
    %562 = vmatprep.subr.mxu0 0.0
    %563 = vmatpush1.msra.mxu0 0.0
    %564 = vmatprep.subr.mxu0 0.0
    %565 = vmatpush1.msra.mxu0 0.0
    %566 = vmatprep.subr.mxu0 0.0
    %567 = vmatpush1.msra.mxu0 0.0
    %568 = vmatprep.subr.mxu0 0.0
    %569 = vmatpush1.msra.mxu0 0.0
    %570 = vmatprep.subr.mxu0 0.0
    %571 = vmatpush1.msra.mxu0 0.0
    %572 = vmatprep.subr.mxu0 0.0
    %573 = vmatpush1.msra.mxu0 0.0
    %574 = vmatprep.subr.mxu0 0.0
    %575 = vmatpush1.msra.mxu0 0.0
    %576 = vmatprep.subr.mxu0 0.0
    %577 = vmatpush1.msra.mxu0 0.0
    %578 = vmatprep.subr.mxu0 0.0
    %579 = vmatpush1.msra.mxu0 0.0
    %580 = vmatprep.subr.mxu0 0.0
    %581 = vmatpush1.msra.mxu0 0.0
    %582 = vmatprep.subr.mxu0 0.0
    %583 = vmatpush1.msra.mxu0 0.0
    %584 = vmatprep.subr.mxu0 0.0
    %585 = vmatpush1.msra.mxu0 0.0
    %586 = vmatprep.subr.mxu0 0.0
    %587 = vmatpush1.msra.mxu0 0.0
    %588 = vmatprep.subr.mxu0 0.0
    %589 = vmatpush1.msra.mxu0 0.0
    %590 = vmatprep.mubr.f32.mxu0 0.0
    %v591 = vand.u32 %v89, 4294901760
    %v592 = vsub.f32 %v89, %v591
    %593 = vmatmul.mubr.f32.gmra.mrb[0].mxu0 %v592
    %v594 = vpop.f32.mrb[0].mxu0
    %v595 = vadd.f32 %v458, %v594
    %v596 = vpop.f32.mrb[0].mxu0
    %v597 = vadd.f32 %v460, %v596
    %598 = vdwg.mxu0
    %v599 = vand.u32 %v91, 4294901760
    %600 = vmatprep.subr.mxu0 %v599
    %v601 = vand.u32 %v90, 4294901760
    %602 = vmatpush1.msra.mxu0 %v601
    %v603 = vand.u32 %v93, 4294901760
    %604 = vmatprep.subr.mxu0 %v603
    %v605 = vand.u32 %v92, 4294901760
    %606 = vmatpush1.msra.mxu0 %v605
    %v607 = vand.u32 %v95, 4294901760
    %608 = vmatprep.subr.mxu0 %v607
    %v609 = vand.u32 %v94, 4294901760
    %610 = vmatpush1.msra.mxu0 %v609
    %v611 = vand.u32 %v97, 4294901760
    %612 = vmatprep.subr.mxu0 %v611
    %v613 = vand.u32 %v96, 4294901760
    %614 = vmatpush1.msra.mxu0 %v613
    %v615 = vand.u32 %v99, 4294901760
    %616 = vmatprep.subr.mxu0 %v615
    %v617 = vand.u32 %v98, 4294901760
    %618 = vmatpush1.msra.mxu0 %v617
    %v619 = vand.u32 %v101, 4294901760
    %620 = vmatprep.subr.mxu0 %v619
    %v621 = vand.u32 %v100, 4294901760
    %622 = vmatpush1.msra.mxu0 %v621
    %v623 = vand.u32 %v103, 4294901760
    %624 = vmatprep.subr.mxu0 %v623
    %v625 = vand.u32 %v102, 4294901760
    %626 = vmatpush1.msra.mxu0 %v625
    %v627 = vand.u32 %v105, 4294901760
    %628 = vmatprep.subr.mxu0 %v627
    %v629 = vand.u32 %v104, 4294901760
    %630 = vmatpush1.msra.mxu0 %v629
    %v631 = vand.u32 %v107, 4294901760
    %632 = vmatprep.subr.mxu0 %v631
    %v633 = vand.u32 %v106, 4294901760
    %634 = vmatpush1.msra.mxu0 %v633
    %v635 = vand.u32 %v109, 4294901760
    %636 = vmatprep.subr.mxu0 %v635
    %v637 = vand.u32 %v108, 4294901760
    %638 = vmatpush1.msra.mxu0 %v637
    %v639 = vand.u32 %v111, 4294901760
    %640 = vmatprep.subr.mxu0 %v639
    %v641 = vand.u32 %v110, 4294901760
    %642 = vmatpush1.msra.mxu0 %v641
    %v643 = vand.u32 %v113, 4294901760
    %644 = vmatprep.subr.mxu0 %v643
    %v645 = vand.u32 %v112, 4294901760
    %646 = vmatpush1.msra.mxu0 %v645
    %v647 = vand.u32 %v115, 4294901760
    %648 = vmatprep.subr.mxu0 %v647
    %v649 = vand.u32 %v114, 4294901760
    %650 = vmatpush1.msra.mxu0 %v649
    %v651 = vand.u32 %v117, 4294901760
    %652 = vmatprep.subr.mxu0 %v651
    %v653 = vand.u32 %v116, 4294901760
    %654 = vmatpush1.msra.mxu0 %v653
    %v655 = vand.u32 %v119, 4294901760
    %656 = vmatprep.subr.mxu0 %v655
    %v657 = vand.u32 %v118, 4294901760
    %658 = vmatpush1.msra.mxu0 %v657
    %v659 = vand.u32 %v121, 4294901760
    %660 = vmatprep.subr.mxu0 %v659
    %v661 = vand.u32 %v120, 4294901760
    %662 = vmatpush1.msra.mxu0 %v661
    %663 = vmatprep.subr.mxu0 0.0
    %664 = vmatpush1.msra.mxu0 0.0
    %665 = vmatprep.subr.mxu0 0.0
    %666 = vmatpush1.msra.mxu0 0.0
    %667 = vmatprep.subr.mxu0 0.0
    %668 = vmatpush1.msra.mxu0 0.0
    %669 = vmatprep.subr.mxu0 0.0
    %670 = vmatpush1.msra.mxu0 0.0
    %671 = vmatprep.subr.mxu0 0.0
    %672 = vmatpush1.msra.mxu0 0.0
    %673 = vmatprep.subr.mxu0 0.0
    %674 = vmatpush1.msra.mxu0 0.0
    %675 = vmatprep.subr.mxu0 0.0
    %676 = vmatpush1.msra.mxu0 0.0
    %677 = vmatprep.subr.mxu0 0.0
    %678 = vmatpush1.msra.mxu0 0.0
    %679 = vmatprep.subr.mxu0 0.0
    %680 = vmatpush1.msra.mxu0 0.0
    %681 = vmatprep.subr.mxu0 0.0
    %682 = vmatpush1.msra.mxu0 0.0
    %683 = vmatprep.subr.mxu0 0.0
    %684 = vmatpush1.msra.mxu0 0.0
    %685 = vmatprep.subr.mxu0 0.0
    %686 = vmatpush1.msra.mxu0 0.0
    %687 = vmatprep.subr.mxu0 0.0
    %688 = vmatpush1.msra.mxu0 0.0
    %689 = vmatprep.subr.mxu0 0.0
    %690 = vmatpush1.msra.mxu0 0.0
    %691 = vmatprep.subr.mxu0 0.0
    %692 = vmatpush1.msra.mxu0 0.0
    %693 = vmatprep.subr.mxu0 0.0
    %694 = vmatpush1.msra.mxu0 0.0
    %695 = vmatprep.mubr.f32.mxu0 0.0
    %v696 = vand.u32 %v89, 4294901760
    %v697 = vsub.f32 %v89, %v696
    %v698 = vand.u32 %v697, 4294901760
    %699 = vmatmul.mubr.f32.gmra.mrb[0].mxu0 %v698
    %v700 = vpop.f32.mrb[0].mxu0
    %v701 = vadd.f32 %v595, %v700
    %v702 = vpop.f32.mrb[0].mxu0
    %v703 = vadd.f32 %v597, %v702
    %704 = vdwg.mxu0
    %v705 = vand.u32 %v91, 4294901760
    %v706 = vsub.f32 %v91, %v705
    %v707 = vand.u32 %v706, 4294901760
    %708 = vmatprep.subr.mxu0 %v707
    %v709 = vand.u32 %v90, 4294901760
    %v710 = vsub.f32 %v90, %v709
    %v711 = vand.u32 %v710, 4294901760
    %712 = vmatpush1.msra.mxu0 %v711
    %v713 = vand.u32 %v93, 4294901760
    %v714 = vsub.f32 %v93, %v713
    %v715 = vand.u32 %v714, 4294901760
    %716 = vmatprep.subr.mxu0 %v715
    %v717 = vand.u32 %v92, 4294901760
    %v718 = vsub.f32 %v92, %v717
    %v719 = vand.u32 %v718, 4294901760
    %720 = vmatpush1.msra.mxu0 %v719
    %v721 = vand.u32 %v95, 4294901760
    %v722 = vsub.f32 %v95, %v721
    %v723 = vand.u32 %v722, 4294901760
    %724 = vmatprep.subr.mxu0 %v723
    %v725 = vand.u32 %v94, 4294901760
    %v726 = vsub.f32 %v94, %v725
    %v727 = vand.u32 %v726, 4294901760
    %728 = vmatpush1.msra.mxu0 %v727
    %v729 = vand.u32 %v97, 4294901760
    %v730 = vsub.f32 %v97, %v729
    %v731 = vand.u32 %v730, 4294901760
    %732 = vmatprep.subr.mxu0 %v731
    %v733 = vand.u32 %v96, 4294901760
    %v734 = vsub.f32 %v96, %v733
    %v735 = vand.u32 %v734, 4294901760
    %736 = vmatpush1.msra.mxu0 %v735
    %v737 = vand.u32 %v99, 4294901760
    %v738 = vsub.f32 %v99, %v737
    %v739 = vand.u32 %v738, 4294901760
    %740 = vmatprep.subr.mxu0 %v739
    %v741 = vand.u32 %v98, 4294901760
    %v742 = vsub.f32 %v98, %v741
    %v743 = vand.u32 %v742, 4294901760
    %744 = vmatpush1.msra.mxu0 %v743
    %v745 = vand.u32 %v101, 4294901760
    %v746 = vsub.f32 %v101, %v745
    %v747 = vand.u32 %v746, 4294901760
    %748 = vmatprep.subr.mxu0 %v747
    %v749 = vand.u32 %v100, 4294901760
    %v750 = vsub.f32 %v100, %v749
    %v751 = vand.u32 %v750, 4294901760
    %752 = vmatpush1.msra.mxu0 %v751
    %v753 = vand.u32 %v103, 4294901760
    %v754 = vsub.f32 %v103, %v753
    %v755 = vand.u32 %v754, 4294901760
    %756 = vmatprep.subr.mxu0 %v755
    %v757 = vand.u32 %v102, 4294901760
    %v758 = vsub.f32 %v102, %v757
    %v759 = vand.u32 %v758, 4294901760
    %760 = vmatpush1.msra.mxu0 %v759
    %v761 = vand.u32 %v105, 4294901760
    %v762 = vsub.f32 %v105, %v761
    %v763 = vand.u32 %v762, 4294901760
    %764 = vmatprep.subr.mxu0 %v763
    %v765 = vand.u32 %v104, 4294901760
    %v766 = vsub.f32 %v104, %v765
    %v767 = vand.u32 %v766, 4294901760
    %768 = vmatpush1.msra.mxu0 %v767
    %v769 = vand.u32 %v107, 4294901760
    %v770 = vsub.f32 %v107, %v769
    %v771 = vand.u32 %v770, 4294901760
    %772 = vmatprep.subr.mxu0 %v771
    %v773 = vand.u32 %v106, 4294901760
    %v774 = vsub.f32 %v106, %v773
    %v775 = vand.u32 %v774, 4294901760
    %776 = vmatpush1.msra.mxu0 %v775
    %v777 = vand.u32 %v109, 4294901760
    %v778 = vsub.f32 %v109, %v777
    %v779 = vand.u32 %v778, 4294901760
    %780 = vmatprep.subr.mxu0 %v779
    %v781 = vand.u32 %v108, 4294901760
    %v782 = vsub.f32 %v108, %v781
    %v783 = vand.u32 %v782, 4294901760
    %784 = vmatpush1.msra.mxu0 %v783
    %v785 = vand.u32 %v111, 4294901760
    %v786 = vsub.f32 %v111, %v785
    %v787 = vand.u32 %v786, 4294901760
    %788 = vmatprep.subr.mxu0 %v787
    %v789 = vand.u32 %v110, 4294901760
    %v790 = vsub.f32 %v110, %v789
    %v791 = vand.u32 %v790, 4294901760
    %792 = vmatpush1.msra.mxu0 %v791
    %v793 = vand.u32 %v113, 4294901760
    %v794 = vsub.f32 %v113, %v793
    %v795 = vand.u32 %v794, 4294901760
    %796 = vmatprep.subr.mxu0 %v795
    %v797 = vand.u32 %v112, 4294901760
    %v798 = vsub.f32 %v112, %v797
    %v799 = vand.u32 %v798, 4294901760
    %800 = vmatpush1.msra.mxu0 %v799
    %v801 = vand.u32 %v115, 4294901760
    %v802 = vsub.f32 %v115, %v801
    %v803 = vand.u32 %v802, 4294901760
    %804 = vmatprep.subr.mxu0 %v803
    %v805 = vand.u32 %v114, 4294901760
    %v806 = vsub.f32 %v114, %v805
    %v807 = vand.u32 %v806, 4294901760
    %808 = vmatpush1.msra.mxu0 %v807
    %v809 = vand.u32 %v117, 4294901760
    %v810 = vsub.f32 %v117, %v809
    %v811 = vand.u32 %v810, 4294901760
    %812 = vmatprep.subr.mxu0 %v811
    %v813 = vand.u32 %v116, 4294901760
    %v814 = vsub.f32 %v116, %v813
    %v815 = vand.u32 %v814, 4294901760
    %816 = vmatpush1.msra.mxu0 %v815
    %v817 = vand.u32 %v119, 4294901760
    %v818 = vsub.f32 %v119, %v817
    %v819 = vand.u32 %v818, 4294901760
    %820 = vmatprep.subr.mxu0 %v819
    %v821 = vand.u32 %v118, 4294901760
    %v822 = vsub.f32 %v118, %v821
    %v823 = vand.u32 %v822, 4294901760
    %824 = vmatpush1.msra.mxu0 %v823
    %v825 = vand.u32 %v121, 4294901760
    %v826 = vsub.f32 %v121, %v825
    %v827 = vand.u32 %v826, 4294901760
    %828 = vmatprep.subr.mxu0 %v827
    %v829 = vand.u32 %v120, 4294901760
    %v830 = vsub.f32 %v120, %v829
    %v831 = vand.u32 %v830, 4294901760
    %832 = vmatpush1.msra.mxu0 %v831
    %833 = vmatprep.subr.mxu0 0.0
    %834 = vmatpush1.msra.mxu0 0.0
    %835 = vmatprep.subr.mxu0 0.0
    %836 = vmatpush1.msra.mxu0 0.0
    %837 = vmatprep.subr.mxu0 0.0
    %838 = vmatpush1.msra.mxu0 0.0
    %839 = vmatprep.subr.mxu0 0.0
    %840 = vmatpush1.msra.mxu0 0.0
    %841 = vmatprep.subr.mxu0 0.0
    %842 = vmatpush1.msra.mxu0 0.0
    %843 = vmatprep.subr.mxu0 0.0
    %844 = vmatpush1.msra.mxu0 0.0
    %845 = vmatprep.subr.mxu0 0.0
    %846 = vmatpush1.msra.mxu0 0.0
    %847 = vmatprep.subr.mxu0 0.0
    %848 = vmatpush1.msra.mxu0 0.0
    %849 = vmatprep.subr.mxu0 0.0
    %850 = vmatpush1.msra.mxu0 0.0
    %851 = vmatprep.subr.mxu0 0.0
    %852 = vmatpush1.msra.mxu0 0.0
    %853 = vmatprep.subr.mxu0 0.0
    %854 = vmatpush1.msra.mxu0 0.0
    %855 = vmatprep.subr.mxu0 0.0
    %856 = vmatpush1.msra.mxu0 0.0
    %857 = vmatprep.subr.mxu0 0.0
    %858 = vmatpush1.msra.mxu0 0.0
    %859 = vmatprep.subr.mxu0 0.0
    %860 = vmatpush1.msra.mxu0 0.0
    %861 = vmatprep.subr.mxu0 0.0
    %862 = vmatpush1.msra.mxu0 0.0
    %863 = vmatprep.subr.mxu0 0.0
    %864 = vmatpush1.msra.mxu0 0.0
    %865 = vmatprep.mubr.f32.mxu0 0.0
    %v866 = vand.u32 %v89, 4294901760
    %867 = vmatmul.mubr.f32.gmra.mrb[0].mxu0 %v866
    %v868 = vpop.f32.mrb[0].mxu0
    %v869 = vadd.f32 %v701, %v868
    %v870 = vpop.f32.mrb[0].mxu0
    %v871 = vadd.f32 %v703, %v870
    %872 = vdwg.mxu0
    %v873 = vand.u32 %v91, 4294901760
    %874 = vmatprep.subr.mxu0 %v873
    %v875 = vand.u32 %v90, 4294901760
    %876 = vmatpush1.msra.mxu0 %v875
    %v877 = vand.u32 %v93, 4294901760
    %878 = vmatprep.subr.mxu0 %v877
    %v879 = vand.u32 %v92, 4294901760
    %880 = vmatpush1.msra.mxu0 %v879
    %v881 = vand.u32 %v95, 4294901760
    %882 = vmatprep.subr.mxu0 %v881
    %v883 = vand.u32 %v94, 4294901760
    %884 = vmatpush1.msra.mxu0 %v883
    %v885 = vand.u32 %v97, 4294901760
    %886 = vmatprep.subr.mxu0 %v885
    %v887 = vand.u32 %v96, 4294901760
    %888 = vmatpush1.msra.mxu0 %v887
    %v889 = vand.u32 %v99, 4294901760
    %890 = vmatprep.subr.mxu0 %v889
    %v891 = vand.u32 %v98, 4294901760
    %892 = vmatpush1.msra.mxu0 %v891
    %v893 = vand.u32 %v101, 4294901760
    %894 = vmatprep.subr.mxu0 %v893
    %v895 = vand.u32 %v100, 4294901760
    %896 = vmatpush1.msra.mxu0 %v895
    %v897 = vand.u32 %v103, 4294901760
    %898 = vmatprep.subr.mxu0 %v897
    %v899 = vand.u32 %v102, 4294901760
    %900 = vmatpush1.msra.mxu0 %v899
    %v901 = vand.u32 %v105, 4294901760
    %902 = vmatprep.subr.mxu0 %v901
    %v903 = vand.u32 %v104, 4294901760
    %904 = vmatpush1.msra.mxu0 %v903
    %v905 = vand.u32 %v107, 4294901760
    %906 = vmatprep.subr.mxu0 %v905
    %v907 = vand.u32 %v106, 4294901760
    %908 = vmatpush1.msra.mxu0 %v907
    %v909 = vand.u32 %v109, 4294901760
    %910 = vmatprep.subr.mxu0 %v909
    %v911 = vand.u32 %v108, 4294901760
    %912 = vmatpush1.msra.mxu0 %v911
    %v913 = vand.u32 %v111, 4294901760
    %914 = vmatprep.subr.mxu0 %v913
    %v915 = vand.u32 %v110, 4294901760
    %916 = vmatpush1.msra.mxu0 %v915
    %v917 = vand.u32 %v113, 4294901760
    %918 = vmatprep.subr.mxu0 %v917
    %v919 = vand.u32 %v112, 4294901760
    %920 = vmatpush1.msra.mxu0 %v919
    %v921 = vand.u32 %v115, 4294901760
    %922 = vmatprep.subr.mxu0 %v921
    %v923 = vand.u32 %v114, 4294901760
    %924 = vmatpush1.msra.mxu0 %v923
    %v925 = vand.u32 %v117, 4294901760
    %926 = vmatprep.subr.mxu0 %v925
    %v927 = vand.u32 %v116, 4294901760
    %928 = vmatpush1.msra.mxu0 %v927
    %v929 = vand.u32 %v119, 4294901760
    %930 = vmatprep.subr.mxu0 %v929
    %v931 = vand.u32 %v118, 4294901760
    %932 = vmatpush1.msra.mxu0 %v931
    %v933 = vand.u32 %v121, 4294901760
    %934 = vmatprep.subr.mxu0 %v933
    %v935 = vand.u32 %v120, 4294901760
    %936 = vmatpush1.msra.mxu0 %v935
    %937 = vmatprep.subr.mxu0 0.0
    %938 = vmatpush1.msra.mxu0 0.0
    %939 = vmatprep.subr.mxu0 0.0
    %940 = vmatpush1.msra.mxu0 0.0
    %941 = vmatprep.subr.mxu0 0.0
    %942 = vmatpush1.msra.mxu0 0.0
    %943 = vmatprep.subr.mxu0 0.0
    %944 = vmatpush1.msra.mxu0 0.0
    %945 = vmatprep.subr.mxu0 0.0
    %946 = vmatpush1.msra.mxu0 0.0
    %947 = vmatprep.subr.mxu0 0.0
    %948 = vmatpush1.msra.mxu0 0.0
    %949 = vmatprep.subr.mxu0 0.0
    %950 = vmatpush1.msra.mxu0 0.0
    %951 = vmatprep.subr.mxu0 0.0
    %952 = vmatpush1.msra.mxu0 0.0
    %953 = vmatprep.subr.mxu0 0.0
    %954 = vmatpush1.msra.mxu0 0.0
    %955 = vmatprep.subr.mxu0 0.0
    %956 = vmatpush1.msra.mxu0 0.0
    %957 = vmatprep.subr.mxu0 0.0
    %958 = vmatpush1.msra.mxu0 0.0
    %959 = vmatprep.subr.mxu0 0.0
    %960 = vmatpush1.msra.mxu0 0.0
    %961 = vmatprep.subr.mxu0 0.0
    %962 = vmatpush1.msra.mxu0 0.0
    %963 = vmatprep.subr.mxu0 0.0
    %964 = vmatpush1.msra.mxu0 0.0
    %965 = vmatprep.subr.mxu0 0.0
    %966 = vmatpush1.msra.mxu0 0.0
    %967 = vmatprep.subr.mxu0 0.0
    %968 = vmatpush1.msra.mxu0 0.0
    %969 = vmatprep.mubr.f32.mxu0 0.0
    %v970 = vand.u32 %v89, 4294901760
    %971 = vmatmul.mubr.f32.gmra.mrb[0].mxu0 %v970
    %v972 = vpop.f32.mrb[0].mxu0
    %v973 = vadd.f32 %v869, %v972
    %v974 = vpop.f32.mrb[0].mxu0
    %v975 = vadd.f32 %v871, %v974
    %976 = vdwg.mxu0
    %977 = vst [vmem:[#allocation7] sm:$0xff] %v973
    %978 = vst [vmem:[#allocation7 + $0x8] sm:$0xff] %v975
    // Predicated region
    $region18: #{tpu_custom_call.1} parent=1 // pred_check
      _
    $region19: #{tpu_custom_call.1} parent=1 // pred_check_branch
      %980 = sbr.rel (0) target = $region21
    $region20: #{tpu_custom_call.1} parent=1 // pred_region
      %s982 = ssub.s32 256, 256
      %983 = vsyncadd [#allocation4], %s982
      %s985 = sshll.u32 [#allocation7], 4
      %s986 = int_to_ptr.vmem [resolvable:$true] %s985
      %988 = dma.vmem_to_hbm [thread:$0]  %s986, 256, %s2, [#allocation4]
    $region21: #{tpu_custom_call.1} parent=1 // pred_fallthru
      _
    // Predicated region
    $region22: #{tpu_custom_call.1} parent=1 // pred_check
      _
    $region23: #{tpu_custom_call.1} parent=1 // pred_check_branch
      %990 = sbr.rel (0) target = $region25
    $region24: #{tpu_custom_call.1} parent=1 // pred_region
      %991 = dma.done [#allocation4], 256
    $region25: #{tpu_custom_call.1} parent=1 // pred_fallthru
      _
    %992 = vsyncpa [#allocation3], 1
    %993 = vsyncpa [#allocation6], 1
    %994 = vsyncpa [#allocation4], 1

</llo_original>
